<compile_context>
chip_gen: v6e
topology: v6e:2x2x1
jax: 0.10.0
libtpu: 0.0.40
codegen_flags: <defaults>
</compile_context>

<pallas_src>
import jax
import jax.numpy as jnp
from jax.experimental import pallas as pl
from jax.experimental.pallas import tpu as pltpu


def _round_up(x, m):
    return ((x + m - 1) // m) * m


def _cdiv(a, b):
    return -(-a // b)


def _mxu_lane():
    """Feature-dim padding granularity: 256 on 256-wide MXUs (v6e/v7x), else 128."""
    try:
        kind = jax.devices()[0].device_kind.lower()
    except Exception:
        return 128
    if any(t in kind for t in ("v6", "v7", "7x")):
        return 256
    return 128


def _tpu_vmem_capacity():
    """Per-TensorCore VMEM bytes (generation aware, conservative fallback)."""
    try:
        return int(pltpu.get_tpu_info().vmem_capacity_bytes)
    except Exception:
        pass
    try:
        kind = jax.devices()[0].device_kind.lower()
        if any(t in kind for t in ("v7", "7x")):
            return 64 << 20
        if any(t in kind for t in ("v5", "v6")):
            return 128 << 20
    except Exception:
        pass
    return 64 << 20


def _expert_kernel(x_ref, w1_ref, b1_ref, w2_ref, b2_ref, o_ref, acc_ref):
    """One (batch-tile, hidden-tile) grid step of y = relu(x@W1 + b1)@W2 + b2."""
    j = pl.program_id(1)

    @pl.when(j == 0)
    def _init():
        acc_ref[...] = jnp.zeros_like(acc_ref)

    # fc1 partial for this hidden tile: MXU matmul with f32 accumulation; bias
    # add + ReLU stay in f32.  ReLU is elementwise over hidden, so tiling the
    # hidden dim is mathematically exact.
    h = jnp.dot(x_ref[...], w1_ref[...], preferred_element_type=jnp.float32)
    h = jnp.maximum(h + b1_ref[...], 0.0)

    # fc2 partial product, accumulated over hidden tiles in the f32 scratch.
    acc_ref[...] += jnp.dot(h.astype(w2_ref.dtype), w2_ref[...],
                            preferred_element_type=jnp.float32)

    @pl.when(j == pl.num_programs(1) - 1)
    def _finalize():
        o_ref[...] = (acc_ref[...] + b2_ref[...]).astype(o_ref.dtype)


def make_expert(w1, b1, w2, b2, *, block_b=512, block_h=None, weight_dtype=None):
    """Build a jitted callable x -> relu(x @ w1 + b1) @ w2 + b2.

    w1: (input_dim, hidden), b1: (hidden,) or (1, hidden),
    w2: (hidden, output_dim), b2: (output_dim,) or (1, output_dim).
    Parameters are padded (and optionally cast) exactly once here; the returned
    callable only pads/slices the activations.
    """
    w1 = jnp.asarray(w1)
    w2 = jnp.asarray(w2)
    b1 = jnp.asarray(b1).reshape(1, -1)
    b2 = jnp.asarray(b2).reshape(1, -1)

    d_in, hidden = w1.shape
    d_out = w2.shape[1]
    assert w2.shape[0] == hidden and b1.shape[1] == hidden and b2.shape[1] == d_out

    if weight_dtype is not None:
        # bf16 weights feed the MXU natively; biases stay f32 and are added in
        # the f32 accumulator; matmul accumulation stays f32.
        w1 = w1.astype(weight_dtype)
        w2 = w2.astype(weight_dtype)

    lane = _mxu_lane()
    vmem_cap = _tpu_vmem_capacity()
    hard_cap = int(0.85 * vmem_cap)          # headroom for compiler scratch

    d_in_p = _round_up(d_in, lane)
    d_out_p = _round_up(d_out, lane)
    h_full = _round_up(hidden, lane)
    w_isz = jnp.dtype(w1.dtype).itemsize
    b_isz = jnp.dtype(b1.dtype).itemsize

    # --- hidden-dim tiling (static, weights-only decision) --------------------
    # Keep weights fully resident with a SINGLE buffer when they fit; otherwise
    # stream double-buffered hidden tiles over an "arbitrary" reduction axis.
    def _weight_tile_bytes(th_, nbuf):
        return nbuf * (w_isz * (d_in_p * th_ + th_ * d_out_p) + b_isz * 8 * th_)

    weight_budget = int(0.55 * vmem_cap)
    if block_h is not None:
        th = _round_up(min(block_h, h_full), lane)
    elif _weight_tile_bytes(h_full, 1) <= weight_budget:
        th = h_full
    else:
        n = 2
        th = _round_up(_cdiv(h_full, n), lane)
        while th > lane and _weight_tile_bytes(th, 2) > weight_budget:
            n *= 2
            th = _round_up(_cdiv(h_full, n), lane)
    n_h = _cdiv(hidden, th)
    h_p = n_h * th
    nbuf_w = 1 if n_h == 1 else 2

    # --- one-time parameter padding (zero padding is exact for this MLP) ------
    w1_p = jnp.pad(w1, ((0, d_in_p - d_in), (0, h_p - hidden)))
    b1_p = jnp.pad(b1, ((0, 0), (0, h_p - hidden)))
    w2_p = jnp.pad(w2, ((0, h_p - hidden), (0, d_out_p - d_out)))
    b2_p = jnp.pad(b2, ((0, 0), (0, d_out_p - d_out)))

    def _spec(shape, index_map, single_buffer):
        if single_buffer:
            # Constant block index: one buffer is enough (no re-fetch, half VMEM).
            return pl.BlockSpec(shape, index_map, pipeline_mode=pl.Buffered(1))
        return pl.BlockSpec(shape, index_map)

    def _forward(x, w1_p, b1_p, w2_p, b2_p):
        B, x_d_in = x.shape
        assert x_d_in == d_in, (x_d_in, d_in)
        x_isz = x.dtype.itemsize

        def vmem_needed(tb_):
            return (
                2 * tb_ * d_in_p * x_isz                 # x tile (double-buffered)
                + 2 * tb_ * d_out_p * x_isz              # out tile (double-buffered)
                + _weight_tile_bytes(th, nbuf_w)         # w1 / b1 / w2 tiles
                + 8 * d_out_p * b_isz                    # b2 (single buffer)
                + tb_ * d_out_p * 4                      # f32 accumulator scratch
                + tb_ * th * 4                           # f32 hidden intermediate
            )

        # Batch tile: >=2 grid steps whenever B allows (feeds both v7x TCs and
        # enables pipelining), capped at block_b, shrunk if VMEM-bound.
        tb = min(block_b, max(8, _round_up(_cdiv(B, 2), 8)))
        while tb > 8 and vmem_needed(tb) > hard_cap:
            tb = max(8, _round_up(tb // 2, 8))
        b_p = _round_up(B, tb)

        vmem_limit = int(1.5 * vmem_needed(tb)) + (2 << 20)
        vmem_limit = max(min(vmem_limit, hard_cap), min(32 << 20, hard_cap))

        x_p = x if (b_p == B and d_in_p == d_in) else jnp.pad(
            x, ((0, b_p - B), (0, d_in_p - d_in)))

        out_p = pl.pallas_call(
            _expert_kernel,
            out_shape=jax.ShapeDtypeStruct((b_p, d_out_p), x.dtype),
            grid=(b_p // tb, n_h),
            in_specs=[
                # x tile walks the batch; constant across the hidden axis.
                pl.BlockSpec((tb, d_in_p), lambda i, j: (i, 0)),
                # Weight / bias tiles walk the hidden axis; single-buffered
                # when fully resident (n_h == 1).
                _spec((d_in_p, th), lambda i, j: (0, j), n_h == 1),
                _spec((1, th), lambda i, j: (0, j), n_h == 1),
                _spec((th, d_out_p), lambda i, j: (j, 0), n_h == 1),
                _spec((1, d_out_p), lambda i, j: (0, 0), True),
            ],
            out_specs=pl.BlockSpec((tb, d_out_p), lambda i, j: (i, 0)),
            scratch_shapes=[pltpu.VMEM((tb, d_out_p), jnp.float32)],
            compiler_params=pltpu.CompilerParams(
                dimension_semantics=("parallel", "arbitrary"),
                vmem_limit_bytes=int(vmem_limit),
            ),
        )(x_p, w1_p, b1_p, w2_p, b2_p)

        # Skip the un-pad slice (an extra HBM copy) when already dense.
        if b_p == B and d_out_p == d_out:
            return out_p
        return out_p[:B, :d_out]

    forward = jax.jit(_forward)
    return lambda x: forward(x, w1_p, b1_p, w2_p, b2_p)


def init_expert_params(key, input_dim, hidden_dim, output_dim, dtype=jnp.float32):
    """Deterministic init mimicking nn.Linear default (uniform +/- 1/sqrt(fan_in))."""
    k1, k2, k3, k4 = jax.random.split(key, 4)
    lim1 = 1.0 / jnp.sqrt(input_dim)
    lim2 = 1.0 / jnp.sqrt(hidden_dim)
    w1 = jax.random.uniform(k1, (input_dim, hidden_dim), dtype, -lim1, lim1)
    b1 = jax.random.uniform(k2, (1, hidden_dim), dtype, -lim1, lim1)
    w2 = jax.random.uniform(k3, (hidden_dim, output_dim), dtype, -lim2, lim2)
    b2 = jax.random.uniform(k4, (1, output_dim), dtype, -lim2, lim2)
    return w1, b1, w2, b2


if __name__ == "__main__":
    key = jax.random.PRNGKey(0)
    kx, kp, kx2, kp2 = jax.random.split(key, 4)

    # --- Test 1: small expert, weights fully resident (n_h == 1 path). --------
    batch, input_dim, hidden_dim, output_dim = 256, 32, 64, 16
    x = jax.random.normal(kx, (batch, input_dim), jnp.float32)
    w1, b1, w2, b2 = init_expert_params(kp, input_dim, hidden_dim, output_dim)

    expert = make_expert(w1, b1, w2, b2, block_b=128)
    out = expert(x)
    jax.block_until_ready(out)

    ref = jnp.maximum(x @ w1 + b1, 0.0) @ w2 + b2
    assert out.shape == (batch, output_dim)
    assert jnp.allclose(out, ref, atol=1e-5, rtol=1e-5), (
        float(jnp.max(jnp.abs(out - ref))))

    # --- Test 2: forced hidden-dim tiling (accumulator / "arbitrary" axis). ---
    batch2, input_dim2, hidden_dim2, output_dim2 = 64, 48, 512, 40
    x2 = jax.random.normal(kx2, (batch2, input_dim2), jnp.float32)
    w1b, b1b, w2b, b2b = init_expert_params(kp2, input_dim2, hidden_dim2, output_dim2)

    expert2 = make_expert(w1b, b1b, w2b, b2b, block_b=64, block_h=128)
    out2 = expert2(x2)
    jax.block_until_ready(out2)

    ref2 = jnp.maximum(x2 @ w1b + b1b, 0.0) @ w2b + b2b
    assert out2.shape == (batch2, output_dim2)
    assert jnp.allclose(out2, ref2, atol=1e-4, rtol=1e-4), (
        float(jnp.max(jnp.abs(out2 - ref2))))

    # --- Test 3: bf16 weights/activations (MXU-native feed, f32 accumulation). -
    # Matches the fp32 reference only to bf16 precision, so just sanity-check.
    expert_bf16 = make_expert(w1, b1, w2, b2, weight_dtype=jnp.bfloat16)
    out_bf16 = expert_bf16(x.astype(jnp.bfloat16))
    jax.block_until_ready(out_bf16)
    assert out_bf16.shape == (batch, output_dim)
    assert bool(jnp.all(jnp.isfinite(out_bf16.astype(jnp.float32))))

    print("KERNEL_OK")
</pallas_src>

<mosaic_0001>
module attributes {stable_mosaic.version = 11 : i64} {
  func.func @_expert_kernel(%arg0: i32, %arg1: i32, %arg2: memref<128x128xf32, #tpu.memory_space<vmem>>, %arg3: memref<128x128xf32, #tpu.memory_space<vmem>>, %arg4: memref<1x128xf32, #tpu.memory_space<vmem>>, %arg5: memref<128x128xf32, #tpu.memory_space<vmem>>, %arg6: memref<1x128xf32, #tpu.memory_space<vmem>>, %arg7: memref<128x128xf32, #tpu.memory_space<vmem>>, %arg8: memref<128x128xf32, #tpu.memory_space<vmem>>) attributes {dimension_semantics = [#tpu.dimension_semantics<parallel>, #tpu.dimension_semantics<arbitrary>], iteration_bounds = array<i64: 2, 1>, scalar_prefetch = 0 : i64, scratch_operands = 1 : i64, tpu.core_type = #tpu.core_type<tc>, window_params = [{transform_indices = @transform_0, window_bounds = array<i64: 128, 128>}, {pipeline_mode = #tpu.pipeline_mode<synchronous>, transform_indices = @transform_1, window_bounds = array<i64: 128, 128>}, {pipeline_mode = #tpu.pipeline_mode<synchronous>, transform_indices = @transform_2, window_bounds = array<i64: 1, 128>}, {pipeline_mode = #tpu.pipeline_mode<synchronous>, transform_indices = @transform_3, window_bounds = array<i64: 128, 128>}, {pipeline_mode = #tpu.pipeline_mode<synchronous>, transform_indices = @transform_4, window_bounds = array<i64: 1, 128>}, {transform_indices = @transform_5, window_bounds = array<i64: 128, 128>}]} {
    %c0_i32 = arith.constant 0 : i32
    %0 = arith.cmpi eq, %arg1, %c0_i32 : i32
    %1 = arith.extui %0 : i1 to i32
    %c0_i32_0 = arith.constant 0 : i32
    %2 = arith.cmpi ne, %1, %c0_i32_0 : i32
    scf.if %2 {
      %cst_16 = arith.constant 0.000000e+00 : f32
      %19 = vector.broadcast %cst_16 : f32 to vector<128x128xf32>
      %c0_17 = arith.constant 0 : index
      %c0_18 = arith.constant 0 : index
      %20 = vector.load %arg8[%c0_17, %c0_18] : memref<128x128xf32, #tpu.memory_space<vmem>>, vector<128x128xf32>
      tpu.vector_store %arg8[%c0_17, %c0_18], %19 {strides = array<i32>} : memref<128x128xf32, #tpu.memory_space<vmem>>, vector<128x128xf32>,
    } else {
    }
    %c0 = arith.constant 0 : index
    %c0_1 = arith.constant 0 : index
    %3 = vector.load %arg2[%c0, %c0_1] : memref<128x128xf32, #tpu.memory_space<vmem>>, vector<128x128xf32>
    %c0_2 = arith.constant 0 : index
    %c0_3 = arith.constant 0 : index
    %4 = vector.load %arg3[%c0_2, %c0_3] : memref<128x128xf32, #tpu.memory_space<vmem>>, vector<128x128xf32>
    %cst = arith.constant dense<0.000000e+00> : vector<128x128xf32>
    %5 = tpu.matmul %3, %4, %cst {dimension_numbers = #tpu.dot_dimension_numbers<[1], [0], [0], [1], [0, 0, 1, 1], [], []>} : vector<128x128xf32>, vector<128x128xf32>, vector<128x128xf32> -> vector<128x128xf32>
    %c0_4 = arith.constant 0 : index
    %c0_5 = arith.constant 0 : index
    %6 = vector.load %arg4[%c0_4, %c0_5] : memref<1x128xf32, #tpu.memory_space<vmem>>, vector<1x128xf32>
    %7 = vector.broadcast %6 : vector<1x128xf32> to vector<128x128xf32>
    %8 = arith.addf %5, %7 : vector<128x128xf32>
    %cst_6 = arith.constant 0.000000e+00 : f32
    %9 = vector.broadcast %cst_6 : f32 to vector<128x128xf32>
    %10 = arith.maximumf %8, %9 : vector<128x128xf32>
    %c0_7 = arith.constant 0 : index
    %c0_8 = arith.constant 0 : index
    %11 = vector.load %arg8[%c0_7, %c0_8] : memref<128x128xf32, #tpu.memory_space<vmem>>, vector<128x128xf32>
    %c0_9 = arith.constant 0 : index
    %c0_10 = arith.constant 0 : index
    %12 = vector.load %arg5[%c0_9, %c0_10] : memref<128x128xf32, #tpu.memory_space<vmem>>, vector<128x128xf32>
    %cst_11 = arith.constant dense<0.000000e+00> : vector<128x128xf32>
    %13 = tpu.matmul %10, %12, %cst_11 {dimension_numbers = #tpu.dot_dimension_numbers<[1], [0], [0], [1], [0, 0, 1, 1], [], []>} : vector<128x128xf32>, vector<128x128xf32>, vector<128x128xf32> -> vector<128x128xf32>
    %14 = arith.addf %11, %13 : vector<128x128xf32>
    %c0_12 = arith.constant 0 : index
    %c0_13 = arith.constant 0 : index
    %15 = vector.load %arg8[%c0_12, %c0_13] : memref<128x128xf32, #tpu.memory_space<vmem>>, vector<128x128xf32>
    tpu.vector_store %arg8[%c0_12, %c0_13], %14 {strides = array<i32>} : memref<128x128xf32, #tpu.memory_space<vmem>>, vector<128x128xf32>,
    %c0_i32_14 = arith.constant 0 : i32
    %16 = arith.cmpi eq, %arg1, %c0_i32_14 : i32
    %17 = arith.extui %16 : i1 to i32
    %c0_i32_15 = arith.constant 0 : i32
    %18 = arith.cmpi ne, %17, %c0_i32_15 : i32
    scf.if %18 {
      %c0_16 = arith.constant 0 : index
      %c0_17 = arith.constant 0 : index
      %19 = vector.load %arg8[%c0_16, %c0_17] : memref<128x128xf32, #tpu.memory_space<vmem>>, vector<128x128xf32>
      %c0_18 = arith.constant 0 : index
      %c0_19 = arith.constant 0 : index
      %20 = vector.load %arg6[%c0_18, %c0_19] : memref<1x128xf32, #tpu.memory_space<vmem>>, vector<1x128xf32>
      %21 = vector.broadcast %20 : vector<1x128xf32> to vector<128x128xf32>
      %22 = arith.addf %19, %21 : vector<128x128xf32>
      %c0_20 = arith.constant 0 : index
      %c0_21 = arith.constant 0 : index
      %23 = vector.load %arg7[%c0_20, %c0_21] : memref<128x128xf32, #tpu.memory_space<vmem>>, vector<128x128xf32>
      tpu.vector_store %arg7[%c0_20, %c0_21], %22 {strides = array<i32>} : memref<128x128xf32, #tpu.memory_space<vmem>>, vector<128x128xf32>,
    } else {
    }
    return
  }
  func.func @transform_0(%arg0: i32, %arg1: i32) -> (i32, i32) {
    %c0_i32 = arith.constant 0 : i32
    %c0_i32_0 = arith.constant 0 : i32
    return %arg0, %c0_i32 : i32, i32
  }
  func.func @transform_1(%arg0: i32, %arg1: i32) -> (i32, i32) {
    %c0_i32 = arith.constant 0 : i32
    %c0_i32_0 = arith.constant 0 : i32
    return %c0_i32, %arg1 : i32, i32
  }
  func.func @transform_2(%arg0: i32, %arg1: i32) -> (i32, i32) {
    %c0_i32 = arith.constant 0 : i32
    %c0_i32_0 = arith.constant 0 : i32
    return %c0_i32, %arg1 : i32, i32
  }
  func.func @transform_3(%arg0: i32, %arg1: i32) -> (i32, i32) {
    %c0_i32 = arith.constant 0 : i32
    %c0_i32_0 = arith.constant 0 : i32
    return %arg1, %c0_i32 : i32, i32
  }
  func.func @transform_4(%arg0: i32, %arg1: i32) -> (i32, i32) {
    %c0_i32 = arith.constant 0 : i32
    %c0_i32_0 = arith.constant 0 : i32
    %c0_i32_1 = arith.constant 0 : i32
    return %c0_i32, %c0_i32_0 : i32, i32
  }
  func.func @transform_5(%arg0: i32, %arg1: i32) -> (i32, i32) {
    %c0_i32 = arith.constant 0 : i32
    %c0_i32_0 = arith.constant 0 : i32
    return %arg0, %c0_i32 : i32, i32
  }
}

</mosaic_0001>

<llo_original>
// kernel: _forward.1
$region0: #{_forward.1}
  #allocation0 [shape = 'u32[]', space=smem, size = 0x4, offset = 0x4, fixed_abs, tag = 'smem constant byte address 0x4 - core index']
  #allocation1 [shape = 'u32[144,128]{1,0:T(1,128)}', space=vmem, size = 0x12000, scoped, tag = 'internal scratch']
  #allocation2 [shape = 'f32[128,128]{1,0:T(8,128)}', space=vmem, size = 0x10000, scoped, tag = 'scratch operand']
  %s0 = inlined_call_operand.vmem [shape: f32[256,128], index: 0, kind: input, shape index: {}]
  %s1 = inlined_call_operand.vmem [shape: f32[128,128], index: 1, kind: input, shape index: {}]
  %s2 = inlined_call_operand.vmem [shape: f32[1,128], index: 2, kind: input, shape index: {}]
  %s3 = inlined_call_operand.vmem [shape: f32[128,128], index: 3, kind: input, shape index: {}]
  %s4 = inlined_call_operand.vmem [shape: f32[1,128], index: 4, kind: input, shape index: {}]
  %s5 = inlined_call_operand.vmem [shape: f32[256,128], index: 5, kind: output, shape index: {}]
  %s6 = sld [smem:[#allocation0]]
  $region61: #{_forward.1} parent=0
    _
  %s8 = ssub.s32 1, %s6
  %s9 = scalar_select 0, %s8, %s6
  loop: start=0, step=1, limit=4
  $region2: #{_forward.1} parent=0 // loop_pre_header
    _
  $region3: #{_forward.1} parent=0 // loop_header
    %s11 = sphi 0, %s15
    %p12 = scmp.ge.s32.totalorder %s11, 4
    %s18 = sphi 0, %s30
    %s19 = sphi 0, %s26
    %s20 = sphi 0, %s18
    %s21 = sphi 0, %s19
    %s22 = sphi 0, %s20
    %s23 = sphi 0, %s21
    %s33 = sphi 0, %s35
    %s36 = sphi 0, %s33
    %s37 = sphi 0, %s36
    %s53 = sphi 0, %s37
    %s59 = sphi 0, %s61
    %s62 = sphi 0, %s59
    %s63 = sphi 0, %s62
    %s79 = sphi 0, %s63
    %s85 = sphi 0, %s87
    %s88 = sphi 0, %s85
    %s89 = sphi 0, %s88
    %s105 = sphi 0, %s89
    %s111 = sphi 0, %s113
    %s114 = sphi 0, %s111
    %s115 = sphi 0, %s114
    %s131 = sphi 0, %s115
    %s135 = sphi 0, %s135
    %s137 = sphi 0, %s135
    %s138 = sphi 0, %s137
    %s152 = sphi 0, %s138
    %s158 = sphi 0, %s160
    %s161 = sphi 0, %s158
    %s162 = sphi 0, %s161
    %s178 = sphi 0, %s162
  $region4: #{_forward.1} parent=0 // loop_header_branch
    %14 = sbr.rel (%p12) target = $region8
  $region5: #{_forward.1} parent=0 // loop_body
    %s16 = ssub.s32 %s11, 1
    %s17 = ssub.s32 %s11, 2
    %s24 = sadd.s32 1, %s19
    %p25 = scmp.ge.s32.totalorder %s24, 1
    %s26 = scalar_select %p25, 0, %s24
    %s27 = sadd.s32 1, %s18
    %s28 = scalar_select %p25, %s27, %s18
    %p29 = scmp.ge.s32.totalorder %s28, 2
    %s30 = scalar_select %p29, 0, %s28
    %s31 = ssub.s32 %s18, %s30
    %p32 = scmp.eq.s32.totalorder %s31, 0
    %s34 = sadd.s32 %s33, 1
    %s35 = scalar_select %p32, %s33, %s34
    %p38 = pneg %p32
    %p39 = scmp.eq.s32.totalorder %s11, 1
    %p40 = por %p38, %p39
    %p41 = scmp.ne.s32.totalorder %s33, %s36
    %p42 = scmp.eq.s32.totalorder %s11, 0
    %p43 = por %p41, %p42
    %p44 = scmp.ne.s32.totalorder %s33, %s36
    %p45 = scmp.eq.s32.totalorder %s16, 1
    %p46 = por %p44, %p45
    %p47 = scmp.ne.s32.totalorder %s36, %s37
    %p48 = scmp.eq.s32.totalorder %s16, 0
    %p49 = por %p47, %p48
    %p50 = scmp.ne.s32.totalorder %s36, %s37
    %p51 = scmp.eq.s32.totalorder %s17, 1
    %p52 = por %p50, %p51
    %p54 = scmp.ne.s32.totalorder %s37, %s53
    %p55 = scmp.eq.s32.totalorder %s17, 0
    %p56 = por %p54, %p55
    %s57 = ssub.s32 %s19, %s26
    %p58 = scmp.eq.s32.totalorder %s57, 0
    %s60 = sadd.s32 %s59, 1
    %s61 = scalar_select %p58, %s59, %s60
    %p64 = pneg %p58
    %p65 = scmp.eq.s32.totalorder %s11, 1
    %p66 = por %p64, %p65
    %p67 = scmp.ne.s32.totalorder %s59, %s62
    %p68 = scmp.eq.s32.totalorder %s11, 0
    %p69 = por %p67, %p68
    %p70 = scmp.ne.s32.totalorder %s59, %s62
    %p71 = scmp.eq.s32.totalorder %s16, 1
    %p72 = por %p70, %p71
    %p73 = scmp.ne.s32.totalorder %s62, %s63
    %p74 = scmp.eq.s32.totalorder %s16, 0
    %p75 = por %p73, %p74
    %p76 = scmp.ne.s32.totalorder %s62, %s63
    %p77 = scmp.eq.s32.totalorder %s17, 1
    %p78 = por %p76, %p77
    %p80 = scmp.ne.s32.totalorder %s63, %s79
    %p81 = scmp.eq.s32.totalorder %s17, 0
    %p82 = por %p80, %p81
    %s83 = ssub.s32 %s19, %s26
    %p84 = scmp.eq.s32.totalorder %s83, 0
    %s86 = sadd.s32 %s85, 1
    %s87 = scalar_select %p84, %s85, %s86
    %p90 = pneg %p84
    %p91 = scmp.eq.s32.totalorder %s11, 1
    %p92 = por %p90, %p91
    %p93 = scmp.ne.s32.totalorder %s85, %s88
    %p94 = scmp.eq.s32.totalorder %s11, 0
    %p95 = por %p93, %p94
    %p96 = scmp.ne.s32.totalorder %s85, %s88
    %p97 = scmp.eq.s32.totalorder %s16, 1
    %p98 = por %p96, %p97
    %p99 = scmp.ne.s32.totalorder %s88, %s89
    %p100 = scmp.eq.s32.totalorder %s16, 0
    %p101 = por %p99, %p100
    %p102 = scmp.ne.s32.totalorder %s88, %s89
    %p103 = scmp.eq.s32.totalorder %s17, 1
    %p104 = por %p102, %p103
    %p106 = scmp.ne.s32.totalorder %s89, %s105
    %p107 = scmp.eq.s32.totalorder %s17, 0
    %p108 = por %p106, %p107
    %s109 = ssub.s32 %s19, %s26
    %p110 = scmp.eq.s32.totalorder %s109, 0
    %s112 = sadd.s32 %s111, 1
    %s113 = scalar_select %p110, %s111, %s112
    %p116 = pneg %p110
    %p117 = scmp.eq.s32.totalorder %s11, 1
    %p118 = por %p116, %p117
    %p119 = scmp.ne.s32.totalorder %s111, %s114
    %p120 = scmp.eq.s32.totalorder %s11, 0
    %p121 = por %p119, %p120
    %p122 = scmp.ne.s32.totalorder %s111, %s114
    %p123 = scmp.eq.s32.totalorder %s16, 1
    %p124 = por %p122, %p123
    %p125 = scmp.ne.s32.totalorder %s114, %s115
    %p126 = scmp.eq.s32.totalorder %s16, 0
    %p127 = por %p125, %p126
    %p128 = scmp.ne.s32.totalorder %s114, %s115
    %p129 = scmp.eq.s32.totalorder %s17, 1
    %p130 = por %p128, %p129
    %p132 = scmp.ne.s32.totalorder %s115, %s131
    %p133 = scmp.eq.s32.totalorder %s17, 0
    %p134 = por %p132, %p133
    %s136 = sadd.s32 %s135, 1
    %p139 = scmp.eq.s32.totalorder %s11, 1
    %p140 = scmp.ne.s32.totalorder %s135, %s137
    %p141 = scmp.eq.s32.totalorder %s11, 0
    %p142 = por %p140, %p141
    %p143 = scmp.ne.s32.totalorder %s135, %s137
    %p144 = scmp.eq.s32.totalorder %s16, 1
    %p145 = por %p143, %p144
    %p146 = scmp.ne.s32.totalorder %s137, %s138
    %p147 = scmp.eq.s32.totalorder %s16, 0
    %p148 = por %p146, %p147
    %p149 = scmp.ne.s32.totalorder %s137, %s138
    %p150 = scmp.eq.s32.totalorder %s17, 1
    %p151 = por %p149, %p150
    %p153 = scmp.ne.s32.totalorder %s138, %s152
    %p154 = scmp.eq.s32.totalorder %s17, 0
    %p155 = por %p153, %p154
    %s156 = ssub.s32 %s18, %s30
    %p157 = scmp.eq.s32.totalorder %s156, 0
    %s159 = sadd.s32 %s158, 1
    %s160 = scalar_select %p157, %s158, %s159
    %p163 = pneg %p157
    %p164 = scmp.eq.s32.totalorder %s11, 1
    %p165 = por %p163, %p164
    %p166 = scmp.ne.s32.totalorder %s158, %s161
    %p167 = scmp.eq.s32.totalorder %s11, 0
    %p168 = por %p166, %p167
    %p169 = scmp.ne.s32.totalorder %s158, %s161
    %p170 = scmp.eq.s32.totalorder %s16, 1
    %p171 = por %p169, %p170
    %p172 = scmp.ne.s32.totalorder %s161, %s162
    %p173 = scmp.eq.s32.totalorder %s16, 0
    %p174 = por %p172, %p173
    %p175 = scmp.ne.s32.totalorder %s161, %s162
    %p176 = scmp.eq.s32.totalorder %s17, 1
    %p177 = por %p175, %p176
    %p179 = scmp.ne.s32.totalorder %s162, %s178
    %p180 = scmp.eq.s32.totalorder %s17, 0
    %p181 = por %p179, %p180
    %p182 = scmp.le.s32.totalorder 1, %s11
    %p183 = scmp.lt.s32.totalorder %s11, 3
    %p184 = pnand %p182, %p183
    %p185 = pneg %p184
    // Predicated region
    $region9: #{_forward.1} parent=5 // pred_check
      _
    $region10: #{_forward.1} parent=5 // pred_check_branch
      %187 = sbr.rel (%p184) target = $region12
    $region11: #{_forward.1} parent=5 // pred_region
      %s188 = ssub.s32 %s11, 1
      // Predicated region
      $region13: #{_forward.1} parent=11 // pred_check
        %p189 = pneg %p75
      $region14: #{_forward.1} parent=11 // pred_check_branch
        %191 = sbr.rel (%p189) target = $region16
      $region15: #{_forward.1} parent=11 // pred_region
        %p192 = scmp.lt.s32.totalorder %s21, 0
        %s193 = scalar_select %p192, %s21, 0
        %s194 = smul.addr %s193, 8
        %s195 = scalar_lea.vmem %s1, %s194
      $region16: #{_forward.1} parent=11 // pred_fallthru
        _
      // Predicated region
      $region17: #{_forward.1} parent=11 // pred_check
        %p196 = pneg %p101
      $region18: #{_forward.1} parent=11 // pred_check_branch
        %198 = sbr.rel (%p196) target = $region20
      $region19: #{_forward.1} parent=11 // pred_region
        %p199 = scmp.lt.s32.totalorder %s21, 0
        %s200 = scalar_select %p199, %s21, 0
        %s201 = scalar_lea.vmem %s2, %s200
      $region20: #{_forward.1} parent=11 // pred_fallthru
        _
      // Predicated region
      $region21: #{_forward.1} parent=11 // pred_check
        %p202 = pneg %p127
      $region22: #{_forward.1} parent=11 // pred_check_branch
        %204 = sbr.rel (%p202) target = $region24
      $region23: #{_forward.1} parent=11 // pred_region
        %s205 = smul.u32 16, %s21
        %p206 = scmp.lt.s32.totalorder %s205, 15
        %s207 = scalar_select %p206, %s205, 15
        %s208 = smul.addr %s207, 8
        %s209 = scalar_lea.vmem %s3, %s208
        %s210 = smul.u32 16, %s21
      $region24: #{_forward.1} parent=11 // pred_fallthru
        _
      // Predicated region
      $region25: #{_forward.1} parent=11 // pred_check
        %p211 = pneg %p148
      $region26: #{_forward.1} parent=11 // pred_check_branch
        %213 = sbr.rel (%p211) target = $region28
      $region27: #{_forward.1} parent=11 // pred_region
        _
      $region28: #{_forward.1} parent=11 // pred_fallthru
        _
    $region12: #{_forward.1} parent=5 // pred_fallthru
      _
    %p214 = scmp.lt.s32.totalorder %s11, 2
    // Predicated region
    $region29: #{_forward.1} parent=5 // pred_check
      %p215 = pneg %p214
    $region30: #{_forward.1} parent=5 // pred_check_branch
      %217 = sbr.rel (%p215) target = $region32
    $region31: #{_forward.1} parent=5 // pred_region
      // Predicated region
      $region33: #{_forward.1} parent=31 // pred_check
        %p218 = pneg %p43
      $region34: #{_forward.1} parent=31 // pred_check_branch
        %220 = sbr.rel (%p218) target = $region36
      $region35: #{_forward.1} parent=31 // pred_region
        %s221 = smul.u32 16, %s18
        %p222 = scmp.lt.s32.totalorder %s221, 31
        %s223 = scalar_select %p222, %s221, 31
        %s224 = smul.addr %s223, 8
        %s225 = scalar_lea.vmem %s0, %s224
        %s226 = smul.u32 16, %s18
      $region36: #{_forward.1} parent=31 // pred_fallthru
        _
    $region32: #{_forward.1} parent=5 // pred_fallthru
      _
    %p227 = scmp.le.s32.totalorder 1, %s11
    %p228 = scmp.lt.s32.totalorder %s11, 3
    %p229 = pnand %p227, %p228
    %p230 = pneg %p229
    // Predicated region
    $region37: #{_forward.1} parent=5 // pred_check
      _
    $region38: #{_forward.1} parent=5 // pred_check_branch
      %232 = sbr.rel (%p229) target = $region40
    $region39: #{_forward.1} parent=5 // pred_region
      %s233 = ssub.s32 %s11, 1
      %s234 = smul.u32 16, %s20
      %p235 = scmp.lt.s32.totalorder %s234, 31
      %s236 = scalar_select %p235, %s234, 31
      %s237 = smul.addr %s236, 8
      %s238 = scalar_lea.vmem %s0, %s237
      %p239 = pneg %p49
      %p240 = pneg %p46
      %p241 = scmp.lt.s32.totalorder %s21, 0
      %s242 = scalar_select %p241, %s21, 0
      %s243 = smul.addr %s242, 8
      %s244 = scalar_lea.vmem %s1, %s243
      %p245 = pneg %p75
      %p246 = pneg %p72
      %p247 = scmp.lt.s32.totalorder %s21, 0
      %s248 = scalar_select %p247, %s21, 0
      %s249 = scalar_lea.vmem %s2, %s248
      %p250 = pneg %p101
      %p251 = pneg %p98
      %s252 = smul.u32 16, %s21
      %p253 = scmp.lt.s32.totalorder %s252, 15
      %s254 = scalar_select %p253, %s252, 15
      %s255 = smul.addr %s254, 8
      %s256 = scalar_lea.vmem %s3, %s255
      %p257 = pneg %p127
      %p258 = pneg %p124
      %p259 = pneg %p148
      %p260 = pneg %p145
      %p261 = pneg %p174
      %p262 = pneg %p171
      %s263 = smul.u32 16, %s20
      %p264 = scmp.lt.s32.totalorder %s263, 31
      %s265 = scalar_select %p264, %s263, 31
      %s266 = smul.addr %s265, 8
      %s267 = scalar_lea.vmem %s5, %s266
      %s268 = smul.u32 16, %s20
      %p269 = scmp.lt.s32.totalorder %s268, 31
      %s270 = scalar_select %p269, %s268, 31
      %s271 = smul.addr %s270, 8
      %s272 = scalar_lea.vmem %s0, %s271
      %s273 = smul.u32 16, %s20
      %p274 = scmp.lt.s32.totalorder %s21, 0
      %s275 = scalar_select %p274, %s21, 0
      %s276 = smul.addr %s275, 8
      %s277 = scalar_lea.vmem %s1, %s276
      %p278 = scmp.lt.s32.totalorder %s21, 0
      %s279 = scalar_select %p278, %s21, 0
      %s280 = scalar_lea.vmem %s2, %s279
      %s281 = smul.u32 16, %s21
      %p282 = scmp.lt.s32.totalorder %s281, 15
      %s283 = scalar_select %p282, %s281, 15
      %s284 = smul.addr %s283, 8
      %s285 = scalar_lea.vmem %s3, %s284
      %s286 = smul.u32 16, %s21
      %s287 = smul.u32 16, %s20
      %p288 = scmp.lt.s32.totalorder %s287, 31
      %s289 = scalar_select %p288, %s287, 31
      %s290 = smul.addr %s289, 8
      %s291 = scalar_lea.vmem %s5, %s290
      %s292 = smul.u32 16, %s20
      %p293 = scmp.eq.s32.totalorder %s21, 0
      // Predicated region
      $region41: #{_forward.1} parent=39 // pred_check
        %p294 = pneg %p293
      $region42: #{_forward.1} parent=39 // pred_check_branch
        %296 = sbr.rel (%p294) target = $region44
      $region43: #{_forward.1} parent=39 // pred_region
        %297 = vst [vmem:[#allocation2] sm:$0xff] 0.0
        %298 = vst [vmem:[#allocation2 + $0x8] sm:$0xff] 0.0
        %299 = vst [vmem:[#allocation2 + $0x10] sm:$0xff] 0.0
        %300 = vst [vmem:[#allocation2 + $0x18] sm:$0xff] 0.0
        %301 = vst [vmem:[#allocation2 + $0x20] sm:$0xff] 0.0
        %302 = vst [vmem:[#allocation2 + $0x28] sm:$0xff] 0.0
        %303 = vst [vmem:[#allocation2 + $0x30] sm:$0xff] 0.0
        %304 = vst [vmem:[#allocation2 + $0x38] sm:$0xff] 0.0
        %305 = vst [vmem:[#allocation2 + $0x40] sm:$0xff] 0.0
        %306 = vst [vmem:[#allocation2 + $0x48] sm:$0xff] 0.0
        %307 = vst [vmem:[#allocation2 + $0x50] sm:$0xff] 0.0
        %308 = vst [vmem:[#allocation2 + $0x58] sm:$0xff] 0.0
        %309 = vst [vmem:[#allocation2 + $0x60] sm:$0xff] 0.0
        %310 = vst [vmem:[#allocation2 + $0x68] sm:$0xff] 0.0
        %311 = vst [vmem:[#allocation2 + $0x70] sm:$0xff] 0.0
        %312 = vst [vmem:[#allocation2 + $0x78] sm:$0xff] 0.0
      $region44: #{_forward.1} parent=39 // pred_fallthru
        _
      %v313 = vld [vmem:[%s272] sm:$0xff]
      %v314 = vld [vmem:[%s272 + $0x8] sm:$0xff]
      %v315 = vld [vmem:[%s272 + $0x10] sm:$0xff]
      %v316 = vld [vmem:[%s272 + $0x18] sm:$0xff]
      %v317 = vld [vmem:[%s272 + $0x20] sm:$0xff]
      %v318 = vld [vmem:[%s272 + $0x28] sm:$0xff]
      %v319 = vld [vmem:[%s272 + $0x30] sm:$0xff]
      %v320 = vld [vmem:[%s272 + $0x38] sm:$0xff]
      %v321 = vld [vmem:[%s272 + $0x40] sm:$0xff]
      %v322 = vld [vmem:[%s272 + $0x48] sm:$0xff]
      %v323 = vld [vmem:[%s272 + $0x50] sm:$0xff]
      %v324 = vld [vmem:[%s272 + $0x58] sm:$0xff]
      %v325 = vld [vmem:[%s272 + $0x60] sm:$0xff]
      %v326 = vld [vmem:[%s272 + $0x68] sm:$0xff]
      %v327 = vld [vmem:[%s272 + $0x70] sm:$0xff]
      %v328 = vld [vmem:[%s272 + $0x78] sm:$0xff]
      %v329 = vld [vmem:[%s277] sm:$0xff]
      %v330 = vld [vmem:[%s277 + $0x8] sm:$0xff]
      %v331 = vld [vmem:[%s277 + $0x10] sm:$0xff]
      %v332 = vld [vmem:[%s277 + $0x18] sm:$0xff]
      %v333 = vld [vmem:[%s277 + $0x20] sm:$0xff]
      %v334 = vld [vmem:[%s277 + $0x28] sm:$0xff]
      %v335 = vld [vmem:[%s277 + $0x30] sm:$0xff]
      %v336 = vld [vmem:[%s277 + $0x38] sm:$0xff]
      %v337 = vld [vmem:[%s277 + $0x40] sm:$0xff]
      %v338 = vld [vmem:[%s277 + $0x48] sm:$0xff]
      %v339 = vld [vmem:[%s277 + $0x50] sm:$0xff]
      %v340 = vld [vmem:[%s277 + $0x58] sm:$0xff]
      %v341 = vld [vmem:[%s277 + $0x60] sm:$0xff]
      %v342 = vld [vmem:[%s277 + $0x68] sm:$0xff]
      %v343 = vld [vmem:[%s277 + $0x70] sm:$0xff]
      %v344 = vld [vmem:[%s277 + $0x78] sm:$0xff]
      %v345 = vld [vmem:[%s280] sm:$0x1]
      %v347 = vlaneseq
      %v348 = vshrl.u32 %v347, 7
      %v349 = vsub.s32 0, %v348
      %v350 = vrot.slane %v345, %v349
      %352 = vmatprep.subr.mxu0 0.0
      %353 = vmatpush1.msra.mxu0 %v344
      %354 = vmatprep.subr.mxu0 0.0
      %355 = vmatpush1.msra.mxu0 %v343
      %356 = vmatprep.subr.mxu0 0.0
      %357 = vmatpush1.msra.mxu0 %v342
      %358 = vmatprep.subr.mxu0 0.0
      %359 = vmatpush1.msra.mxu0 %v341
      %360 = vmatprep.subr.mxu0 0.0
      %361 = vmatpush1.msra.mxu0 %v340
      %362 = vmatprep.subr.mxu0 0.0
      %363 = vmatpush1.msra.mxu0 %v339
      %364 = vmatprep.subr.mxu0 0.0
      %365 = vmatpush1.msra.mxu0 %v338
      %366 = vmatprep.subr.mxu0 0.0
      %367 = vmatpush1.msra.mxu0 %v337
      %368 = vmatprep.subr.mxu0 0.0
      %369 = vmatpush1.msra.mxu0 %v336
      %370 = vmatprep.subr.mxu0 0.0
      %371 = vmatpush1.msra.mxu0 %v335
      %372 = vmatprep.subr.mxu0 0.0
      %373 = vmatpush1.msra.mxu0 %v334
      %374 = vmatprep.subr.mxu0 0.0
      %375 = vmatpush1.msra.mxu0 %v333
      %376 = vmatprep.subr.mxu0 0.0
      %377 = vmatpush1.msra.mxu0 %v332
      %378 = vmatprep.subr.mxu0 0.0
      %379 = vmatpush1.msra.mxu0 %v331
      %380 = vmatprep.subr.mxu0 0.0
      %381 = vmatpush1.msra.mxu0 %v330
      %382 = vmatprep.subr.mxu0 0.0
      %383 = vmatpush1.msra.mxu0 %v329
      %384 = vmatprep.subr.mxu0 0.0
      %385 = vmatpush2.msra.mxu0 0.0
      %386 = vmatprep.subr.mxu0 0.0
      %387 = vmatpush2.msra.mxu0 0.0
      %388 = vmatprep.subr.mxu0 0.0
      %389 = vmatpush2.msra.mxu0 0.0
      %390 = vmatprep.subr.mxu0 0.0
      %391 = vmatpush2.msra.mxu0 0.0
      %392 = vmatprep.subr.mxu0 0.0
      %393 = vmatpush2.msra.mxu0 0.0
      %394 = vmatprep.subr.mxu0 0.0
      %395 = vmatpush2.msra.mxu0 0.0
      %396 = vmatprep.subr.mxu0 0.0
      %397 = vmatpush2.msra.mxu0 0.0
      %398 = vmatprep.subr.mxu0 0.0
      %399 = vmatpush2.msra.mxu0 0.0
      %400 = vmatprep.subr.mxu0 0.0
      %401 = vmatpush2.msra.mxu0 0.0
      %402 = vmatprep.subr.mxu0 0.0
      %403 = vmatpush2.msra.mxu0 0.0
      %404 = vmatprep.subr.mxu0 0.0
      %405 = vmatpush2.msra.mxu0 0.0
      %406 = vmatprep.subr.mxu0 0.0
      %407 = vmatpush2.msra.mxu0 0.0
      %408 = vmatprep.subr.mxu0 0.0
      %409 = vmatpush2.msra.mxu0 0.0
      %410 = vmatprep.subr.mxu0 0.0
      %411 = vmatpush2.msra.mxu0 0.0
      %412 = vmatprep.subr.mxu0 0.0
      %413 = vmatpush2.msra.mxu0 0.0
      %414 = vmatprep.subr.mxu0 0.0
      %415 = vmatpush2.msra.mxu0 0.0
      %416 = vmatprep.mubr.f32.mxu0 0.0
      %417 = vmatmul.mubr.f32.gmra.mxu0 %v313
      %v418 = vpop.f32.mrf.mxu0
      %v419 = vadd.f32 %v350, %v418
      %v420 = vpop.f32.mrf.mxu0
      %421 = vmatprep.mubr.f32.mxu0 0.0
      %422 = vmatmul.mubr.f32.gmra.mxu0 %v314
      %v423 = vpop.f32.mrf.mxu0
      %v424 = vadd.f32 %v350, %v423
      %v425 = vpop.f32.mrf.mxu0
      %426 = vmatprep.mubr.f32.mxu0 0.0
      %427 = vmatmul.mubr.f32.gmra.mxu0 %v315
      %v428 = vpop.f32.mrf.mxu0
      %v429 = vadd.f32 %v350, %v428
      %v430 = vpop.f32.mrf.mxu0
      %431 = vmatprep.mubr.f32.mxu0 0.0
      %432 = vmatmul.mubr.f32.gmra.mxu0 %v316
      %v433 = vpop.f32.mrf.mxu0
      %v434 = vadd.f32 %v350, %v433
      %v435 = vpop.f32.mrf.mxu0
      %436 = vmatprep.mubr.f32.mxu0 0.0
      %437 = vmatmul.mubr.f32.gmra.mxu0 %v317
      %v438 = vpop.f32.mrf.mxu0
      %v439 = vadd.f32 %v350, %v438
      %v440 = vpop.f32.mrf.mxu0
      %441 = vmatprep.mubr.f32.mxu0 0.0
      %442 = vmatmul.mubr.f32.gmra.mxu0 %v318
      %v443 = vpop.f32.mrf.mxu0
      %v444 = vadd.f32 %v350, %v443
      %v445 = vpop.f32.mrf.mxu0
      %446 = vmatprep.mubr.f32.mxu0 0.0
      %447 = vmatmul.mubr.f32.gmra.mxu0 %v319
      %v448 = vpop.f32.mrf.mxu0
      %v449 = vadd.f32 %v350, %v448
      %v450 = vpop.f32.mrf.mxu0
      %451 = vmatprep.mubr.f32.mxu0 0.0
      %452 = vmatmul.mubr.f32.gmra.mxu0 %v320
      %v453 = vpop.f32.mrf.mxu0
      %v454 = vadd.f32 %v350, %v453
      %v455 = vpop.f32.mrf.mxu0
      %456 = vmatprep.mubr.f32.mxu0 0.0
      %457 = vmatmul.mubr.f32.gmra.mxu0 %v321
      %v458 = vpop.f32.mrf.mxu0
      %v459 = vadd.f32 %v350, %v458
      %v460 = vpop.f32.mrf.mxu0
      %461 = vmatprep.mubr.f32.mxu0 0.0
      %462 = vmatmul.mubr.f32.gmra.mxu0 %v322
      %v463 = vpop.f32.mrf.mxu0
      %v464 = vadd.f32 %v350, %v463
      %v465 = vpop.f32.mrf.mxu0
      %466 = vmatprep.mubr.f32.mxu0 0.0
      %467 = vmatmul.mubr.f32.gmra.mxu0 %v323
      %v468 = vpop.f32.mrf.mxu0
      %v469 = vadd.f32 %v350, %v468
      %v470 = vpop.f32.mrf.mxu0
      %471 = vmatprep.mubr.f32.mxu0 0.0
      %472 = vmatmul.mubr.f32.gmra.mxu0 %v324
      %v473 = vpop.f32.mrf.mxu0
      %v474 = vadd.f32 %v350, %v473
      %v475 = vpop.f32.mrf.mxu0
      %476 = vmatprep.mubr.f32.mxu0 0.0
      %477 = vmatmul.mubr.f32.gmra.mxu0 %v325
      %v478 = vpop.f32.mrf.mxu0
      %v479 = vadd.f32 %v350, %v478
      %v480 = vpop.f32.mrf.mxu0
      %481 = vmatprep.mubr.f32.mxu0 0.0
      %482 = vmatmul.mubr.f32.gmra.mxu0 %v326
      %v483 = vpop.f32.mrf.mxu0
      %v484 = vadd.f32 %v350, %v483
      %v485 = vpop.f32.mrf.mxu0
      %486 = vmatprep.mubr.f32.mxu0 0.0
      %487 = vmatmul.mubr.f32.gmra.mxu0 %v327
      %v488 = vpop.f32.mrf.mxu0
      %v489 = vadd.f32 %v350, %v488
      %v490 = vpop.f32.mrf.mxu0
      %491 = vmatprep.mubr.f32.mxu0 0.0
      %492 = vmatmul.mubr.f32.gmra.mxu0 %v328
      %v493 = vpop.f32.mrf.mxu0
      %v494 = vadd.f32 %v350, %v493
      %v495 = vpop.f32.mrf.mxu0
      %496 = vdwg.mxu0
      %v497 = vmax.f32 %v419, 0.0
      %v498 = vmax.f32 %v424, 0.0
      %v499 = vmax.f32 %v429, 0.0
      %v500 = vmax.f32 %v434, 0.0
      %v501 = vmax.f32 %v439, 0.0
      %v502 = vmax.f32 %v444, 0.0
      %v503 = vmax.f32 %v449, 0.0
      %v504 = vmax.f32 %v454, 0.0
      %v505 = vmax.f32 %v459, 0.0
      %v506 = vmax.f32 %v464, 0.0
      %v507 = vmax.f32 %v469, 0.0
      %v508 = vmax.f32 %v474, 0.0
      %v509 = vmax.f32 %v479, 0.0
      %v510 = vmax.f32 %v484, 0.0
      %v511 = vmax.f32 %v489, 0.0
      %v512 = vmax.f32 %v494, 0.0
      %v513 = vld [vmem:[#allocation2] sm:$0xff]
      %v514 = vld [vmem:[#allocation2 + $0x8] sm:$0xff]
      %v515 = vld [vmem:[#allocation2 + $0x10] sm:$0xff]
      %v516 = vld [vmem:[#allocation2 + $0x18] sm:$0xff]
      %v517 = vld [vmem:[#allocation2 + $0x20] sm:$0xff]
      %v518 = vld [vmem:[#allocation2 + $0x28] sm:$0xff]
      %v519 = vld [vmem:[#allocation2 + $0x30] sm:$0xff]
      %v520 = vld [vmem:[#allocation2 + $0x38] sm:$0xff]
      %v521 = vld [vmem:[#allocation2 + $0x40] sm:$0xff]
      %v522 = vld [vmem:[#allocation2 + $0x48] sm:$0xff]
      %v523 = vld [vmem:[#allocation2 + $0x50] sm:$0xff]
      %v524 = vld [vmem:[#allocation2 + $0x58] sm:$0xff]
      %v525 = vld [vmem:[#allocation2 + $0x60] sm:$0xff]
      %v526 = vld [vmem:[#allocation2 + $0x68] sm:$0xff]
      %v527 = vld [vmem:[#allocation2 + $0x70] sm:$0xff]
      %v528 = vld [vmem:[#allocation2 + $0x78] sm:$0xff]
      %v529 = vld [vmem:[%s285] sm:$0xff]
      %v530 = vld [vmem:[%s285 + $0x8] sm:$0xff]
      %v531 = vld [vmem:[%s285 + $0x10] sm:$0xff]
      %v532 = vld [vmem:[%s285 + $0x18] sm:$0xff]
      %v533 = vld [vmem:[%s285 + $0x20] sm:$0xff]
      %v534 = vld [vmem:[%s285 + $0x28] sm:$0xff]
      %v535 = vld [vmem:[%s285 + $0x30] sm:$0xff]
      %v536 = vld [vmem:[%s285 + $0x38] sm:$0xff]
      %v537 = vld [vmem:[%s285 + $0x40] sm:$0xff]
      %v538 = vld [vmem:[%s285 + $0x48] sm:$0xff]
      %v539 = vld [vmem:[%s285 + $0x50] sm:$0xff]
      %v540 = vld [vmem:[%s285 + $0x58] sm:$0xff]
      %v541 = vld [vmem:[%s285 + $0x60] sm:$0xff]
      %v542 = vld [vmem:[%s285 + $0x68] sm:$0xff]
      %v543 = vld [vmem:[%s285 + $0x70] sm:$0xff]
      %v544 = vld [vmem:[%s285 + $0x78] sm:$0xff]
      %545 = vmatprep.subr.mxu0 0.0
      %546 = vmatpush1.msra.mxu0 %v544
      %547 = vmatprep.subr.mxu0 0.0
      %548 = vmatpush1.msra.mxu0 %v543
      %549 = vmatprep.subr.mxu0 0.0
      %550 = vmatpush1.msra.mxu0 %v542
      %551 = vmatprep.subr.mxu0 0.0
      %552 = vmatpush1.msra.mxu0 %v541
      %553 = vmatprep.subr.mxu0 0.0
      %554 = vmatpush1.msra.mxu0 %v540
      %555 = vmatprep.subr.mxu0 0.0
      %556 = vmatpush1.msra.mxu0 %v539
      %557 = vmatprep.subr.mxu0 0.0
      %558 = vmatpush1.msra.mxu0 %v538
      %559 = vmatprep.subr.mxu0 0.0
      %560 = vmatpush1.msra.mxu0 %v537
      %561 = vmatprep.subr.mxu0 0.0
      %562 = vmatpush1.msra.mxu0 %v536
      %563 = vmatprep.subr.mxu0 0.0
      %564 = vmatpush1.msra.mxu0 %v535
      %565 = vmatprep.subr.mxu0 0.0
      %566 = vmatpush1.msra.mxu0 %v534
      %567 = vmatprep.subr.mxu0 0.0
      %568 = vmatpush1.msra.mxu0 %v533
      %569 = vmatprep.subr.mxu0 0.0
      %570 = vmatpush1.msra.mxu0 %v532
      %571 = vmatprep.subr.mxu0 0.0
      %572 = vmatpush1.msra.mxu0 %v531
      %573 = vmatprep.subr.mxu0 0.0
      %574 = vmatpush1.msra.mxu0 %v530
      %575 = vmatprep.subr.mxu0 0.0
      %576 = vmatpush1.msra.mxu0 %v529
      %577 = vmatprep.subr.mxu0 0.0
      %578 = vmatpush2.msra.mxu0 0.0
      %579 = vmatprep.subr.mxu0 0.0
      %580 = vmatpush2.msra.mxu0 0.0
      %581 = vmatprep.subr.mxu0 0.0
      %582 = vmatpush2.msra.mxu0 0.0
      %583 = vmatprep.subr.mxu0 0.0
      %584 = vmatpush2.msra.mxu0 0.0
      %585 = vmatprep.subr.mxu0 0.0
      %586 = vmatpush2.msra.mxu0 0.0
      %587 = vmatprep.subr.mxu0 0.0
      %588 = vmatpush2.msra.mxu0 0.0
      %589 = vmatprep.subr.mxu0 0.0
      %590 = vmatpush2.msra.mxu0 0.0
      %591 = vmatprep.subr.mxu0 0.0
      %592 = vmatpush2.msra.mxu0 0.0
      %593 = vmatprep.subr.mxu0 0.0
      %594 = vmatpush2.msra.mxu0 0.0
      %595 = vmatprep.subr.mxu0 0.0
      %596 = vmatpush2.msra.mxu0 0.0
      %597 = vmatprep.subr.mxu0 0.0
      %598 = vmatpush2.msra.mxu0 0.0
      %599 = vmatprep.subr.mxu0 0.0
      %600 = vmatpush2.msra.mxu0 0.0
      %601 = vmatprep.subr.mxu0 0.0
      %602 = vmatpush2.msra.mxu0 0.0
      %603 = vmatprep.subr.mxu0 0.0
      %604 = vmatpush2.msra.mxu0 0.0
      %605 = vmatprep.subr.mxu0 0.0
      %606 = vmatpush2.msra.mxu0 0.0
      %607 = vmatprep.subr.mxu0 0.0
      %608 = vmatpush2.msra.mxu0 0.0
      %609 = vmatprep.mubr.f32.mxu0 0.0
      %610 = vmatmul.mubr.f32.gmra.mxu0 %v497
      %v611 = vpop.f32.mrf.mxu0
      %v612 = vadd.f32 0.0, %v611
      %v613 = vpop.f32.mrf.mxu0
      %614 = vmatprep.mubr.f32.mxu0 0.0
      %615 = vmatmul.mubr.f32.gmra.mxu0 %v498
      %v616 = vpop.f32.mrf.mxu0
      %v617 = vadd.f32 0.0, %v616
      %v618 = vpop.f32.mrf.mxu0
      %619 = vmatprep.mubr.f32.mxu0 0.0
      %620 = vmatmul.mubr.f32.gmra.mxu0 %v499
      %v621 = vpop.f32.mrf.mxu0
      %v622 = vadd.f32 0.0, %v621
      %v623 = vpop.f32.mrf.mxu0
      %624 = vmatprep.mubr.f32.mxu0 0.0
      %625 = vmatmul.mubr.f32.gmra.mxu0 %v500
      %v626 = vpop.f32.mrf.mxu0
      %v627 = vadd.f32 0.0, %v626
      %v628 = vpop.f32.mrf.mxu0
      %629 = vmatprep.mubr.f32.mxu0 0.0
      %630 = vmatmul.mubr.f32.gmra.mxu0 %v501
      %v631 = vpop.f32.mrf.mxu0
      %v632 = vadd.f32 0.0, %v631
      %v633 = vpop.f32.mrf.mxu0
      %634 = vmatprep.mubr.f32.mxu0 0.0
      %635 = vmatmul.mubr.f32.gmra.mxu0 %v502
      %v636 = vpop.f32.mrf.mxu0
      %v637 = vadd.f32 0.0, %v636
      %v638 = vpop.f32.mrf.mxu0
      %639 = vmatprep.mubr.f32.mxu0 0.0
      %640 = vmatmul.mubr.f32.gmra.mxu0 %v503
      %v641 = vpop.f32.mrf.mxu0
      %v642 = vadd.f32 0.0, %v641
      %v643 = vpop.f32.mrf.mxu0
      %644 = vmatprep.mubr.f32.mxu0 0.0
      %645 = vmatmul.mubr.f32.gmra.mxu0 %v504
      %v646 = vpop.f32.mrf.mxu0
      %v647 = vadd.f32 0.0, %v646
      %v648 = vpop.f32.mrf.mxu0
      %649 = vmatprep.mubr.f32.mxu0 0.0
      %650 = vmatmul.mubr.f32.gmra.mxu0 %v505
      %v651 = vpop.f32.mrf.mxu0
      %v652 = vadd.f32 0.0, %v651
      %v653 = vpop.f32.mrf.mxu0
      %654 = vmatprep.mubr.f32.mxu0 0.0
      %655 = vmatmul.mubr.f32.gmra.mxu0 %v506
      %v656 = vpop.f32.mrf.mxu0
      %v657 = vadd.f32 0.0, %v656
      %v658 = vpop.f32.mrf.mxu0
      %659 = vmatprep.mubr.f32.mxu0 0.0
      %660 = vmatmul.mubr.f32.gmra.mxu0 %v507
      %v661 = vpop.f32.mrf.mxu0
      %v662 = vadd.f32 0.0, %v661
      %v663 = vpop.f32.mrf.mxu0
      %664 = vmatprep.mubr.f32.mxu0 0.0
      %665 = vmatmul.mubr.f32.gmra.mxu0 %v508
      %v666 = vpop.f32.mrf.mxu0
      %v667 = vadd.f32 0.0, %v666
      %v668 = vpop.f32.mrf.mxu0
      %669 = vmatprep.mubr.f32.mxu0 0.0
      %670 = vmatmul.mubr.f32.gmra.mxu0 %v509
      %v671 = vpop.f32.mrf.mxu0
      %v672 = vadd.f32 0.0, %v671
      %v673 = vpop.f32.mrf.mxu0
      %674 = vmatprep.mubr.f32.mxu0 0.0
      %675 = vmatmul.mubr.f32.gmra.mxu0 %v510
      %v676 = vpop.f32.mrf.mxu0
      %v677 = vadd.f32 0.0, %v676
      %v678 = vpop.f32.mrf.mxu0
      %679 = vmatprep.mubr.f32.mxu0 0.0
      %680 = vmatmul.mubr.f32.gmra.mxu0 %v511
      %v681 = vpop.f32.mrf.mxu0
      %v682 = vadd.f32 0.0, %v681
      %v683 = vpop.f32.mrf.mxu0
      %684 = vmatprep.mubr.f32.mxu0 0.0
      %685 = vmatmul.mubr.f32.gmra.mxu0 %v512
      %v686 = vpop.f32.mrf.mxu0
      %v687 = vadd.f32 0.0, %v686
      %v688 = vpop.f32.mrf.mxu0
      %689 = vdwg.mxu0
      %v690 = vadd.f32 %v513, %v612
      %v691 = vadd.f32 %v514, %v617
      %v692 = vadd.f32 %v515, %v622
      %v693 = vadd.f32 %v516, %v627
      %v694 = vadd.f32 %v517, %v632
      %v695 = vadd.f32 %v518, %v637
      %v696 = vadd.f32 %v519, %v642
      %v697 = vadd.f32 %v520, %v647
      %v698 = vadd.f32 %v521, %v652
      %v699 = vadd.f32 %v522, %v657
      %v700 = vadd.f32 %v523, %v662
      %v701 = vadd.f32 %v524, %v667
      %v702 = vadd.f32 %v525, %v672
      %v703 = vadd.f32 %v526, %v677
      %v704 = vadd.f32 %v527, %v682
      %v705 = vadd.f32 %v528, %v687
      %706 = vst [vmem:[#allocation2] sm:$0xff] %v690
      %707 = vst [vmem:[#allocation2 + $0x8] sm:$0xff] %v691
      %708 = vst [vmem:[#allocation2 + $0x10] sm:$0xff] %v692
      %709 = vst [vmem:[#allocation2 + $0x18] sm:$0xff] %v693
      %710 = vst [vmem:[#allocation2 + $0x20] sm:$0xff] %v694
      %711 = vst [vmem:[#allocation2 + $0x28] sm:$0xff] %v695
      %712 = vst [vmem:[#allocation2 + $0x30] sm:$0xff] %v696
      %713 = vst [vmem:[#allocation2 + $0x38] sm:$0xff] %v697
      %714 = vst [vmem:[#allocation2 + $0x40] sm:$0xff] %v698
      %715 = vst [vmem:[#allocation2 + $0x48] sm:$0xff] %v699
      %716 = vst [vmem:[#allocation2 + $0x50] sm:$0xff] %v700
      %717 = vst [vmem:[#allocation2 + $0x58] sm:$0xff] %v701
      %718 = vst [vmem:[#allocation2 + $0x60] sm:$0xff] %v702
      %719 = vst [vmem:[#allocation2 + $0x68] sm:$0xff] %v703
      %720 = vst [vmem:[#allocation2 + $0x70] sm:$0xff] %v704
      %721 = vst [vmem:[#allocation2 + $0x78] sm:$0xff] %v705
      // Predicated region
      $region45: #{_forward.1} parent=39 // pred_check
        %p722 = pneg %p293
      $region46: #{_forward.1} parent=39 // pred_check_branch
        %724 = sbr.rel (%p722) target = $region48
      $region47: #{_forward.1} parent=39 // pred_region
        %v725 = vld [vmem:[#allocation2] sm:$0xff]
        %v726 = vld [vmem:[#allocation2 + $0x8] sm:$0xff]
        %v727 = vld [vmem:[#allocation2 + $0x10] sm:$0xff]
        %v728 = vld [vmem:[#allocation2 + $0x18] sm:$0xff]
        %v729 = vld [vmem:[#allocation2 + $0x20] sm:$0xff]
        %v730 = vld [vmem:[#allocation2 + $0x28] sm:$0xff]
        %v731 = vld [vmem:[#allocation2 + $0x30] sm:$0xff]
        %v732 = vld [vmem:[#allocation2 + $0x38] sm:$0xff]
        %v733 = vld [vmem:[#allocation2 + $0x40] sm:$0xff]
        %v734 = vld [vmem:[#allocation2 + $0x48] sm:$0xff]
        %v735 = vld [vmem:[#allocation2 + $0x50] sm:$0xff]
        %v736 = vld [vmem:[#allocation2 + $0x58] sm:$0xff]
        %v737 = vld [vmem:[#allocation2 + $0x60] sm:$0xff]
        %v738 = vld [vmem:[#allocation2 + $0x68] sm:$0xff]
        %v739 = vld [vmem:[#allocation2 + $0x70] sm:$0xff]
        %v740 = vld [vmem:[#allocation2 + $0x78] sm:$0xff]
        %v741 = vld [vmem:[%s4] sm:$0x1]
        %v743 = vlaneseq
        %v744 = vshrl.u32 %v743, 7
        %v745 = vsub.s32 0, %v744
        %v746 = vrot.slane %v741, %v745
        %v748 = vadd.f32 %v725, %v746
        %v749 = vadd.f32 %v726, %v746
        %v750 = vadd.f32 %v727, %v746
        %v751 = vadd.f32 %v728, %v746
        %v752 = vadd.f32 %v729, %v746
        %v753 = vadd.f32 %v730, %v746
        %v754 = vadd.f32 %v731, %v746
        %v755 = vadd.f32 %v732, %v746
        %v756 = vadd.f32 %v733, %v746
        %v757 = vadd.f32 %v734, %v746
        %v758 = vadd.f32 %v735, %v746
        %v759 = vadd.f32 %v736, %v746
        %v760 = vadd.f32 %v737, %v746
        %v761 = vadd.f32 %v738, %v746
        %v762 = vadd.f32 %v739, %v746
        %v763 = vadd.f32 %v740, %v746
        %764 = vst [vmem:[%s291] sm:$0xff] %v748
        %765 = vst [vmem:[%s291 + $0x8] sm:$0xff] %v749
        %766 = vst [vmem:[%s291 + $0x10] sm:$0xff] %v750
        %767 = vst [vmem:[%s291 + $0x18] sm:$0xff] %v751
        %768 = vst [vmem:[%s291 + $0x20] sm:$0xff] %v752
        %769 = vst [vmem:[%s291 + $0x28] sm:$0xff] %v753
        %770 = vst [vmem:[%s291 + $0x30] sm:$0xff] %v754
        %771 = vst [vmem:[%s291 + $0x38] sm:$0xff] %v755
        %772 = vst [vmem:[%s291 + $0x40] sm:$0xff] %v756
        %773 = vst [vmem:[%s291 + $0x48] sm:$0xff] %v757
        %774 = vst [vmem:[%s291 + $0x50] sm:$0xff] %v758
        %775 = vst [vmem:[%s291 + $0x58] sm:$0xff] %v759
        %776 = vst [vmem:[%s291 + $0x60] sm:$0xff] %v760
        %777 = vst [vmem:[%s291 + $0x68] sm:$0xff] %v761
        %778 = vst [vmem:[%s291 + $0x70] sm:$0xff] %v762
        %779 = vst [vmem:[%s291 + $0x78] sm:$0xff] %v763
      $region48: #{_forward.1} parent=39 // pred_fallthru
        _
      %s780 = smul.u32 16, %s20
      %p781 = scmp.lt.s32.totalorder %s780, 31
      %s782 = scalar_select %p781, %s780, 31
      %s783 = smul.addr %s782, 8
      %s784 = scalar_lea.vmem %s5, %s783
      // Predicated region
      $region49: #{_forward.1} parent=39 // pred_check
        %p785 = pneg %p171
      $region50: #{_forward.1} parent=39 // pred_check_branch
        %787 = sbr.rel (%p785) target = $region52
      $region51: #{_forward.1} parent=39 // pred_region
        %s788 = smul.u32 16, %s20
      $region52: #{_forward.1} parent=39 // pred_fallthru
        _
    $region40: #{_forward.1} parent=5 // pred_fallthru
      _
    %p789 = scmp.le.s32.totalorder 2, %s11
    // Predicated region
    $region53: #{_forward.1} parent=5 // pred_check
      %p790 = pneg %p789
    $region54: #{_forward.1} parent=5 // pred_check_branch
      %792 = sbr.rel (%p790) target = $region56
    $region55: #{_forward.1} parent=5 // pred_region
      %s793 = ssub.s32 %s11, 2
      // Predicated region
      $region57: #{_forward.1} parent=55 // pred_check
        %p794 = pneg %p177
      $region58: #{_forward.1} parent=55 // pred_check_branch
        %796 = sbr.rel (%p794) target = $region60
      $region59: #{_forward.1} parent=55 // pred_region
        %s797 = smul.u32 16, %s22
        %p798 = scmp.lt.s32.totalorder %s797, 31
        %s799 = scalar_select %p798, %s797, 31
        %s800 = smul.addr %s799, 8
        %s801 = scalar_lea.vmem %s5, %s800
      $region60: #{_forward.1} parent=55 // pred_fallthru
        _
    $region56: #{_forward.1} parent=5 // pred_fallthru
      _
  $region6: #{_forward.1} parent=0 // loop_footer
    %s15 = sadd.s32 1, %s11
  $region7: #{_forward.1} parent=0 // loop_footer_branch
    %10 = sbr.rel target = $region3
  $region8: #{_forward.1} parent=0 // loop_exit
    _

</llo_original>
